<compile_context>
chip_gen: v6e
topology: v6e:2x2x1
jax: 0.10.0
libtpu: 0.0.40
codegen_flags: <defaults>
</compile_context>

<pallas_src>
import jax
import jax.numpy as jnp
from jax.experimental import pallas as pl
from jax.experimental.pallas import tpu as pltpu

K = 3  # depthwise kernel size


def _make_masks(H, W, ksize, nb):
    """Per-tap validity masks for the lane-fused (C, nb*H*W) layout.

    Returns (K*K, 1, nb*H*W) float32 with 1.0 where the shifted tap reads a
    valid in-image pixel and 0.0 on borders (which also kills cross-image /
    global wrap-around of the lane roll)."""
    HW = H * W
    r = ksize // 2
    q = jnp.arange(HW, dtype=jnp.int32)
    h = q // W
    w = q - h * W
    rows = []
    for dy in range(ksize):
        oy = dy - r
        for dx in range(ksize):
            ox = dx - r
            m = (h + oy >= 0) & (h + oy < H) & (w + ox >= 0) & (w + ox < W)
            rows.append(m.astype(jnp.float32))
    masks = jnp.stack(rows, axis=0)          # (K*K, HW)
    masks = jnp.tile(masks, (1, nb))         # (K*K, nb*HW) -- period HW
    return masks[:, None, :]                 # (K*K, 1, nb*HW)


def _make_kernel(H, W, ksize, nb, C):
    HW = H * W
    NBHW = nb * HW
    r = ksize // 2
    center = r * ksize + r

    def kernel(x_ref, m_ref, dw_ref, b2_ref, w3_ref, b3_ref, o_ref):
        # ---- fuse Nb images along the lane axis: (nb, C, HW) -> (C, nb*HW)
        xw = jnp.concatenate(
            [x_ref[n].astype(jnp.float32) for n in range(nb)], axis=1)

        masks = m_ref[...]                               # (K*K, 1, nb*HW) f32
        dw = dw_ref[...].astype(jnp.float32)             # (K*K, C, 1), hoisted

        # ---- depthwise KxK, stride 1, zero pad r: lane-rolled taps ---------
        acc = xw * dw[center]                            # centre tap, no mask
        t = 0
        for dy in range(ksize):
            oy = dy - r
            for dx in range(ksize):
                ox = dx - r
                if oy == 0 and ox == 0:
                    t += 1
                    continue
                shift = (-(oy * W + ox)) % NBHW
                tap = pltpu.roll(xw, shift, 1)           # XLU slot
                acc = acc + (tap * masks[t]) * dw[t]     # mask & weight: vmuls
                t += 1

        # BN2 scale already folded into dw; add bias, ReLU
        h2 = jnp.maximum(acc + b2_ref[...].astype(jnp.float32), 0.0)

        # ---- pointwise 1x1 conv: one wide (Co,C)@(C, nb*HW) MXU matmul -----
        out = jnp.dot(w3_ref[...].astype(jnp.float32), h2,
                      preferred_element_type=jnp.float32)
        out = out + b3_ref[...].astype(jnp.float32) + xw  # bias + residual

        # ---- unfuse: full-lane-width unmasked stores per image -------------
        for n in range(nb):
            o_ref[n] = out[:, n * HW:(n + 1) * HW].astype(o_ref.dtype)

    return kernel


def blocke1(x_nchw, params, nb=2):
    """x_nchw: (N, C, H, W) float32.
    params: (dw_fold, b2, w3_fold, b3) with shapes
      dw_fold (K*K, C, 1), b2 (C, 1), w3_fold (Co, C), b3 (Co, 1).
    nb: images per grid step (size so 2*(in+out) blocks fit scoped VMEM;
        halve on v7x's 64 MiB relative to v5e/v6e).
    Returns (N, Co, H, W)."""
    dw_fold, b2, w3_fold, b3 = params
    N, C, H, W = x_nchw.shape
    Co = w3_fold.shape[0]
    assert Co == C, "residual branch requires in_size == out_size"
    HW = H * W

    # pad batch to a multiple of nb (padded images are dropped after the call)
    n_steps = pl.cdiv(N, nb)
    Np = n_steps * nb
    x = x_nchw.reshape(N, C, HW)   # free: same memory order, lane-dense
    if Np != N:
        x = jnp.concatenate(
            [x, jnp.zeros((Np - N, C, HW), x.dtype)], axis=0)

    masks = _make_masks(H, W, K, nb)   # grid-invariant, computed once

    grid_spec = pltpu.PrefetchScalarGridSpec(
        num_scalar_prefetch=0,
        grid=(n_steps,),
        in_specs=[
            pl.BlockSpec((nb, C, HW), lambda n: (n, 0, 0)),        # x (Nb imgs)
            pl.BlockSpec((K * K, 1, nb * HW), lambda n: (0, 0, 0)),  # tap masks
            pl.BlockSpec((K * K, C, 1), lambda n: (0, 0, 0)),      # dw * s2
            pl.BlockSpec((C, 1), lambda n: (0, 0)),                # b2
            pl.BlockSpec((Co, C), lambda n: (0, 0)),               # w3 * s3
            pl.BlockSpec((Co, 1), lambda n: (0, 0)),               # b3
        ],
        out_specs=pl.BlockSpec((nb, Co, HW), lambda n: (n, 0, 0)),
    )
    out = pl.pallas_call(
        _make_kernel(H, W, K, nb, C),
        out_shape=jax.ShapeDtypeStruct((Np, Co, HW), x.dtype),
        grid_spec=grid_spec,
        compiler_params=pltpu.CompilerParams(
            dimension_semantics=("parallel",)),
    )(x, masks, dw_fold, b2, w3_fold, b3)
    return out[:N].reshape(N, Co, H, W)


def fold_bn(gamma, beta, mean, var, eps=1e-5):
    scale = gamma / jnp.sqrt(var + eps)
    bias = beta - mean * scale
    return scale, bias


if __name__ == "__main__":
    key = jax.random.PRNGKey(0)
    # N=8 with nb=2 -> 4 grid steps (>=2 per TensorCore on v7x).
    N, C, H, W = 8, 8, 16, 16
    Co = C            # out_size == in_size -> residual active
    ks = jax.random.split(key, 5)

    x_nchw = jax.random.normal(ks[0], (N, C, H, W), jnp.float32)

    # conv weights with PyTorch shapes
    wdw_t = jax.random.normal(ks[1], (C, 1, K, K), jnp.float32) * 0.1   # conv2 (depthwise)
    w3_t = jax.random.normal(ks[2], (Co, C, 1, 1), jnp.float32) * 0.1   # conv3 (1x1)

    def bn_params(k, ch):
        k1, k2, k3, k4 = jax.random.split(k, 4)
        gamma = 1.0 + 0.1 * jax.random.normal(k1, (ch,), jnp.float32)
        beta = 0.1 * jax.random.normal(k2, (ch,), jnp.float32)
        mean = 0.1 * jax.random.normal(k3, (ch,), jnp.float32)
        var = 1.0 + 0.1 * jnp.abs(jax.random.normal(k4, (ch,), jnp.float32))
        return gamma, beta, mean, var

    s2, b2 = fold_bn(*bn_params(ks[3], C))
    s3, b3 = fold_bn(*bn_params(ks[4], Co))

    # fold BN scales into the conv weights once, at param-prep time
    dw_fold = (wdw_t.reshape(C, K * K) * s2[:, None]).T.reshape(K * K, C, 1)
    w3_fold = w3_t.reshape(Co, C) * s3[:, None]
    params = (dw_fold, b2.reshape(C, 1), w3_fold, b3.reshape(Co, 1))

    out = jax.block_until_ready(blocke1(x_nchw, params, nb=2))

    # pure-JAX reference (NCHW, unfolded BN) for a correctness check
    y = jax.lax.conv_general_dilated(
        x_nchw, wdw_t, window_strides=(1, 1),
        padding=((K // 2, K // 2), (K // 2, K // 2)),
        dimension_numbers=('NCHW', 'OIHW', 'NCHW'),
        feature_group_count=C)
    y = y * s2.reshape(1, C, 1, 1) + b2.reshape(1, C, 1, 1)
    y = jnp.maximum(y, 0.0)
    z = jax.lax.conv_general_dilated(
        y, w3_t, window_strides=(1, 1), padding=((0, 0), (0, 0)),
        dimension_numbers=('NCHW', 'OIHW', 'NCHW'))
    z = z * s3.reshape(1, Co, 1, 1) + b3.reshape(1, Co, 1, 1)
    ref = z + x_nchw

    err = float(jnp.max(jnp.abs(out - ref)))
    assert jnp.allclose(out, ref, atol=1e-4, rtol=1e-4), f"max abs err {err}"
    print("KERNEL_OK")
</pallas_src>

<mosaic_0001>
module attributes {stable_mosaic.version = 11 : i64} {
  func.func @kernel(%arg0: i32, %arg1: memref<2x8x256xf32, #tpu.memory_space<vmem>>, %arg2: memref<9x1x512xf32, #tpu.memory_space<vmem>>, %arg3: memref<9x8x1xf32, #tpu.memory_space<vmem>>, %arg4: memref<8x1xf32, #tpu.memory_space<vmem>>, %arg5: memref<8x8xf32, #tpu.memory_space<vmem>>, %arg6: memref<8x1xf32, #tpu.memory_space<vmem>>, %arg7: memref<2x8x256xf32, #tpu.memory_space<vmem>>) attributes {dimension_semantics = [#tpu.dimension_semantics<parallel>], iteration_bounds = array<i64: 4>, scalar_prefetch = 0 : i64, scratch_operands = 0 : i64, tpu.core_type = #tpu.core_type<tc>, window_params = [{transform_indices = @transform_0, window_bounds = array<i64: 2, 8, 256>}, {pipeline_mode = #tpu.pipeline_mode<synchronous>, transform_indices = @transform_1, window_bounds = array<i64: 9, 1, 512>}, {pipeline_mode = #tpu.pipeline_mode<synchronous>, transform_indices = @transform_2, window_bounds = array<i64: 9, 8, 1>}, {pipeline_mode = #tpu.pipeline_mode<synchronous>, transform_indices = @transform_3, window_bounds = array<i64: 8, 1>}, {pipeline_mode = #tpu.pipeline_mode<synchronous>, transform_indices = @transform_4, window_bounds = array<i64: 8, 8>}, {pipeline_mode = #tpu.pipeline_mode<synchronous>, transform_indices = @transform_5, window_bounds = array<i64: 8, 1>}, {transform_indices = @transform_6, window_bounds = array<i64: 2, 8, 256>}]} {
    %c0 = arith.constant 0 : index
    %c0_0 = arith.constant 0 : index
    %c0_1 = arith.constant 0 : index
    %0 = vector.load %arg1[%c0, %c0_0, %c0_1] : memref<2x8x256xf32, #tpu.memory_space<vmem>>, vector<1x8x256xf32>
    %1 = vector.shape_cast %0 : vector<1x8x256xf32> to vector<8x256xf32>
    %c1 = arith.constant 1 : index
    %c0_2 = arith.constant 0 : index
    %c0_3 = arith.constant 0 : index
    %2 = vector.load %arg1[%c1, %c0_2, %c0_3] : memref<2x8x256xf32, #tpu.memory_space<vmem>>, vector<1x8x256xf32>
    %3 = vector.shape_cast %2 : vector<1x8x256xf32> to vector<8x256xf32>
    %4 = tpu.concatenate %1, %3 in 1 : vector<8x256xf32>, vector<8x256xf32> -> vector<8x512xf32>
    %c0_4 = arith.constant 0 : index
    %c0_5 = arith.constant 0 : index
    %c0_6 = arith.constant 0 : index
    %5 = vector.load %arg2[%c0_4, %c0_5, %c0_6] : memref<9x1x512xf32, #tpu.memory_space<vmem>>, vector<9x1x512xf32>
    %c0_7 = arith.constant 0 : index
    %c0_8 = arith.constant 0 : index
    %c0_9 = arith.constant 0 : index
    %6 = vector.load %arg3[%c0_7, %c0_8, %c0_9] : memref<9x8x1xf32, #tpu.memory_space<vmem>>, vector<9x8x1xf32>
    %7 = vector.extract_strided_slice %6 {offsets = [4, 0, 0], sizes = [1, 8, 1], strides = [1, 1, 1]} : vector<9x8x1xf32> to vector<1x8x1xf32>
    %8 = vector.shape_cast %7 : vector<1x8x1xf32> to vector<8x1xf32>
    %9 = vector.broadcast %8 : vector<8x1xf32> to vector<8x512xf32>
    %10 = arith.mulf %4, %9 : vector<8x512xf32>
    %c17_i32 = arith.constant 17 : i32
    %11 = tpu.dynamic_rotate %4 by %c17_i32 dim 1 : vector<8x512xf32>, i32 -> vector<8x512xf32>
    %12 = vector.extract_strided_slice %5 {offsets = [0, 0, 0], sizes = [1, 1, 512], strides = [1, 1, 1]} : vector<9x1x512xf32> to vector<1x1x512xf32>
    %13 = vector.shape_cast %12 : vector<1x1x512xf32> to vector<1x512xf32>
    %14 = vector.broadcast %13 : vector<1x512xf32> to vector<8x512xf32>
    %15 = arith.mulf %11, %14 : vector<8x512xf32>
    %16 = vector.extract_strided_slice %6 {offsets = [0, 0, 0], sizes = [1, 8, 1], strides = [1, 1, 1]} : vector<9x8x1xf32> to vector<1x8x1xf32>
    %17 = vector.shape_cast %16 : vector<1x8x1xf32> to vector<8x1xf32>
    %18 = vector.broadcast %17 : vector<8x1xf32> to vector<8x512xf32>
    %19 = arith.mulf %15, %18 : vector<8x512xf32>
    %20 = arith.addf %10, %19 : vector<8x512xf32>
    %c16_i32 = arith.constant 16 : i32
    %21 = tpu.dynamic_rotate %4 by %c16_i32 dim 1 : vector<8x512xf32>, i32 -> vector<8x512xf32>
    %22 = vector.extract_strided_slice %5 {offsets = [1, 0, 0], sizes = [1, 1, 512], strides = [1, 1, 1]} : vector<9x1x512xf32> to vector<1x1x512xf32>
    %23 = vector.shape_cast %22 : vector<1x1x512xf32> to vector<1x512xf32>
    %24 = vector.broadcast %23 : vector<1x512xf32> to vector<8x512xf32>
    %25 = arith.mulf %21, %24 : vector<8x512xf32>
    %26 = vector.extract_strided_slice %6 {offsets = [1, 0, 0], sizes = [1, 8, 1], strides = [1, 1, 1]} : vector<9x8x1xf32> to vector<1x8x1xf32>
    %27 = vector.shape_cast %26 : vector<1x8x1xf32> to vector<8x1xf32>
    %28 = vector.broadcast %27 : vector<8x1xf32> to vector<8x512xf32>
    %29 = arith.mulf %25, %28 : vector<8x512xf32>
    %30 = arith.addf %20, %29 : vector<8x512xf32>
    %c15_i32 = arith.constant 15 : i32
    %31 = tpu.dynamic_rotate %4 by %c15_i32 dim 1 : vector<8x512xf32>, i32 -> vector<8x512xf32>
    %32 = vector.extract_strided_slice %5 {offsets = [2, 0, 0], sizes = [1, 1, 512], strides = [1, 1, 1]} : vector<9x1x512xf32> to vector<1x1x512xf32>
    %33 = vector.shape_cast %32 : vector<1x1x512xf32> to vector<1x512xf32>
    %34 = vector.broadcast %33 : vector<1x512xf32> to vector<8x512xf32>
    %35 = arith.mulf %31, %34 : vector<8x512xf32>
    %36 = vector.extract_strided_slice %6 {offsets = [2, 0, 0], sizes = [1, 8, 1], strides = [1, 1, 1]} : vector<9x8x1xf32> to vector<1x8x1xf32>
    %37 = vector.shape_cast %36 : vector<1x8x1xf32> to vector<8x1xf32>
    %38 = vector.broadcast %37 : vector<8x1xf32> to vector<8x512xf32>
    %39 = arith.mulf %35, %38 : vector<8x512xf32>
    %40 = arith.addf %30, %39 : vector<8x512xf32>
    %c1_i32 = arith.constant 1 : i32
    %41 = tpu.dynamic_rotate %4 by %c1_i32 dim 1 : vector<8x512xf32>, i32 -> vector<8x512xf32>
    %42 = vector.extract_strided_slice %5 {offsets = [3, 0, 0], sizes = [1, 1, 512], strides = [1, 1, 1]} : vector<9x1x512xf32> to vector<1x1x512xf32>
    %43 = vector.shape_cast %42 : vector<1x1x512xf32> to vector<1x512xf32>
    %44 = vector.broadcast %43 : vector<1x512xf32> to vector<8x512xf32>
    %45 = arith.mulf %41, %44 : vector<8x512xf32>
    %46 = vector.extract_strided_slice %6 {offsets = [3, 0, 0], sizes = [1, 8, 1], strides = [1, 1, 1]} : vector<9x8x1xf32> to vector<1x8x1xf32>
    %47 = vector.shape_cast %46 : vector<1x8x1xf32> to vector<8x1xf32>
    %48 = vector.broadcast %47 : vector<8x1xf32> to vector<8x512xf32>
    %49 = arith.mulf %45, %48 : vector<8x512xf32>
    %50 = arith.addf %40, %49 : vector<8x512xf32>
    %c511_i32 = arith.constant 511 : i32
    %51 = tpu.dynamic_rotate %4 by %c511_i32 dim 1 : vector<8x512xf32>, i32 -> vector<8x512xf32>
    %52 = vector.extract_strided_slice %5 {offsets = [5, 0, 0], sizes = [1, 1, 512], strides = [1, 1, 1]} : vector<9x1x512xf32> to vector<1x1x512xf32>
    %53 = vector.shape_cast %52 : vector<1x1x512xf32> to vector<1x512xf32>
    %54 = vector.broadcast %53 : vector<1x512xf32> to vector<8x512xf32>
    %55 = arith.mulf %51, %54 : vector<8x512xf32>
    %56 = vector.extract_strided_slice %6 {offsets = [5, 0, 0], sizes = [1, 8, 1], strides = [1, 1, 1]} : vector<9x8x1xf32> to vector<1x8x1xf32>
    %57 = vector.shape_cast %56 : vector<1x8x1xf32> to vector<8x1xf32>
    %58 = vector.broadcast %57 : vector<8x1xf32> to vector<8x512xf32>
    %59 = arith.mulf %55, %58 : vector<8x512xf32>
    %60 = arith.addf %50, %59 : vector<8x512xf32>
    %c497_i32 = arith.constant 497 : i32
    %61 = tpu.dynamic_rotate %4 by %c497_i32 dim 1 : vector<8x512xf32>, i32 -> vector<8x512xf32>
    %62 = vector.extract_strided_slice %5 {offsets = [6, 0, 0], sizes = [1, 1, 512], strides = [1, 1, 1]} : vector<9x1x512xf32> to vector<1x1x512xf32>
    %63 = vector.shape_cast %62 : vector<1x1x512xf32> to vector<1x512xf32>
    %64 = vector.broadcast %63 : vector<1x512xf32> to vector<8x512xf32>
    %65 = arith.mulf %61, %64 : vector<8x512xf32>
    %66 = vector.extract_strided_slice %6 {offsets = [6, 0, 0], sizes = [1, 8, 1], strides = [1, 1, 1]} : vector<9x8x1xf32> to vector<1x8x1xf32>
    %67 = vector.shape_cast %66 : vector<1x8x1xf32> to vector<8x1xf32>
    %68 = vector.broadcast %67 : vector<8x1xf32> to vector<8x512xf32>
    %69 = arith.mulf %65, %68 : vector<8x512xf32>
    %70 = arith.addf %60, %69 : vector<8x512xf32>
    %c496_i32 = arith.constant 496 : i32
    %71 = tpu.dynamic_rotate %4 by %c496_i32 dim 1 : vector<8x512xf32>, i32 -> vector<8x512xf32>
    %72 = vector.extract_strided_slice %5 {offsets = [7, 0, 0], sizes = [1, 1, 512], strides = [1, 1, 1]} : vector<9x1x512xf32> to vector<1x1x512xf32>
    %73 = vector.shape_cast %72 : vector<1x1x512xf32> to vector<1x512xf32>
    %74 = vector.broadcast %73 : vector<1x512xf32> to vector<8x512xf32>
    %75 = arith.mulf %71, %74 : vector<8x512xf32>
    %76 = vector.extract_strided_slice %6 {offsets = [7, 0, 0], sizes = [1, 8, 1], strides = [1, 1, 1]} : vector<9x8x1xf32> to vector<1x8x1xf32>
    %77 = vector.shape_cast %76 : vector<1x8x1xf32> to vector<8x1xf32>
    %78 = vector.broadcast %77 : vector<8x1xf32> to vector<8x512xf32>
    %79 = arith.mulf %75, %78 : vector<8x512xf32>
    %80 = arith.addf %70, %79 : vector<8x512xf32>
    %c495_i32 = arith.constant 495 : i32
    %81 = tpu.dynamic_rotate %4 by %c495_i32 dim 1 : vector<8x512xf32>, i32 -> vector<8x512xf32>
    %82 = vector.extract_strided_slice %5 {offsets = [8, 0, 0], sizes = [1, 1, 512], strides = [1, 1, 1]} : vector<9x1x512xf32> to vector<1x1x512xf32>
    %83 = vector.shape_cast %82 : vector<1x1x512xf32> to vector<1x512xf32>
    %84 = vector.broadcast %83 : vector<1x512xf32> to vector<8x512xf32>
    %85 = arith.mulf %81, %84 : vector<8x512xf32>
    %86 = vector.extract_strided_slice %6 {offsets = [8, 0, 0], sizes = [1, 8, 1], strides = [1, 1, 1]} : vector<9x8x1xf32> to vector<1x8x1xf32>
    %87 = vector.shape_cast %86 : vector<1x8x1xf32> to vector<8x1xf32>
    %88 = vector.broadcast %87 : vector<8x1xf32> to vector<8x512xf32>
    %89 = arith.mulf %85, %88 : vector<8x512xf32>
    %90 = arith.addf %80, %89 : vector<8x512xf32>
    %c0_10 = arith.constant 0 : index
    %c0_11 = arith.constant 0 : index
    %91 = vector.load %arg4[%c0_10, %c0_11] : memref<8x1xf32, #tpu.memory_space<vmem>>, vector<8x1xf32>
    %92 = vector.broadcast %91 : vector<8x1xf32> to vector<8x512xf32>
    %93 = arith.addf %90, %92 : vector<8x512xf32>
    %cst = arith.constant 0.000000e+00 : f32
    %94 = vector.broadcast %cst : f32 to vector<8x512xf32>
    %95 = arith.maximumf %93, %94 : vector<8x512xf32>
    %c0_12 = arith.constant 0 : index
    %c0_13 = arith.constant 0 : index
    %96 = vector.load %arg5[%c0_12, %c0_13] : memref<8x8xf32, #tpu.memory_space<vmem>>, vector<8x8xf32>
    %cst_14 = arith.constant dense<0.000000e+00> : vector<8x512xf32>
    %97 = tpu.matmul %96, %95, %cst_14 {dimension_numbers = #tpu.dot_dimension_numbers<[1], [0], [0], [1], [0, 0, 1, 1], [], []>} : vector<8x8xf32>, vector<8x512xf32>, vector<8x512xf32> -> vector<8x512xf32>
    %c0_15 = arith.constant 0 : index
    %c0_16 = arith.constant 0 : index
    %98 = vector.load %arg6[%c0_15, %c0_16] : memref<8x1xf32, #tpu.memory_space<vmem>>, vector<8x1xf32>
    %99 = vector.broadcast %98 : vector<8x1xf32> to vector<8x512xf32>
    %100 = arith.addf %97, %99 : vector<8x512xf32>
    %101 = arith.addf %100, %4 : vector<8x512xf32>
    %102 = vector.extract_strided_slice %101 {offsets = [0, 0], sizes = [8, 256], strides = [1, 1]} : vector<8x512xf32> to vector<8x256xf32>
    %c0_17 = arith.constant 0 : index
    %c0_18 = arith.constant 0 : index
    %c0_19 = arith.constant 0 : index
    %103 = vector.load %arg7[%c0_17, %c0_18, %c0_19] : memref<2x8x256xf32, #tpu.memory_space<vmem>>, vector<1x8x256xf32>
    %104 = vector.shape_cast %103 : vector<1x8x256xf32> to vector<8x256xf32>
    %105 = vector.shape_cast %102 : vector<8x256xf32> to vector<1x8x256xf32>
    tpu.vector_store %arg7[%c0_17, %c0_18, %c0_19], %105 {strides = array<i32>} : memref<2x8x256xf32, #tpu.memory_space<vmem>>, vector<1x8x256xf32>,
    %106 = vector.extract_strided_slice %101 {offsets = [0, 256], sizes = [8, 256], strides = [1, 1]} : vector<8x512xf32> to vector<8x256xf32>
    %c1_20 = arith.constant 1 : index
    %c0_21 = arith.constant 0 : index
    %c0_22 = arith.constant 0 : index
    %107 = vector.load %arg7[%c1_20, %c0_21, %c0_22] : memref<2x8x256xf32, #tpu.memory_space<vmem>>, vector<1x8x256xf32>
    %108 = vector.shape_cast %107 : vector<1x8x256xf32> to vector<8x256xf32>
    %109 = vector.shape_cast %106 : vector<8x256xf32> to vector<1x8x256xf32>
    tpu.vector_store %arg7[%c1_20, %c0_21, %c0_22], %109 {strides = array<i32>} : memref<2x8x256xf32, #tpu.memory_space<vmem>>, vector<1x8x256xf32>,
    return
  }
  func.func @transform_0(%arg0: i32) -> (i32, i32, i32) {
    %c0_i32 = arith.constant 0 : i32
    %c0_i32_0 = arith.constant 0 : i32
    %c0_i32_1 = arith.constant 0 : i32
    return %arg0, %c0_i32, %c0_i32_0 : i32, i32, i32
  }
  func.func @transform_1(%arg0: i32) -> (i32, i32, i32) {
    %c0_i32 = arith.constant 0 : i32
    %c0_i32_0 = arith.constant 0 : i32
    %c0_i32_1 = arith.constant 0 : i32
    %c0_i32_2 = arith.constant 0 : i32
    return %c0_i32, %c0_i32_0, %c0_i32_1 : i32, i32, i32
  }
  func.func @transform_2(%arg0: i32) -> (i32, i32, i32) {
    %c0_i32 = arith.constant 0 : i32
    %c0_i32_0 = arith.constant 0 : i32
    %c0_i32_1 = arith.constant 0 : i32
    %c0_i32_2 = arith.constant 0 : i32
    return %c0_i32, %c0_i32_0, %c0_i32_1 : i32, i32, i32
  }
  func.func @transform_3(%arg0: i32) -> (i32, i32) {
    %c0_i32 = arith.constant 0 : i32
    %c0_i32_0 = arith.constant 0 : i32
    %c0_i32_1 = arith.constant 0 : i32
    return %c0_i32, %c0_i32_0 : i32, i32
  }
  func.func @transform_4(%arg0: i32) -> (i32, i32) {
    %c0_i32 = arith.constant 0 : i32
    %c0_i32_0 = arith.constant 0 : i32
    %c0_i32_1 = arith.constant 0 : i32
    return %c0_i32, %c0_i32_0 : i32, i32
  }
  func.func @transform_5(%arg0: i32) -> (i32, i32) {
    %c0_i32 = arith.constant 0 : i32
    %c0_i32_0 = arith.constant 0 : i32
    %c0_i32_1 = arith.constant 0 : i32
    return %c0_i32, %c0_i32_0 : i32, i32
  }
  func.func @transform_6(%arg0: i32) -> (i32, i32, i32) {
    %c0_i32 = arith.constant 0 : i32
    %c0_i32_0 = arith.constant 0 : i32
    %c0_i32_1 = arith.constant 0 : i32
    return %arg0, %c0_i32, %c0_i32_0 : i32, i32, i32
  }
}

</mosaic_0001>

<llo_original>
// kernel: tpu_custom_call.1
$region0: #{tpu_custom_call.1}
  #allocation0 [shape = 'u32[]', space=smem, size = 0x4, offset = 0x4, fixed_abs, tag = 'smem constant byte address 0x4 - core index']
  #allocation1 [shape = 'u32[144,128]{1,0:T(1,128)}', space=vmem, size = 0x12000, scoped, tag = 'internal scratch']
  %s0 = inlined_call_operand.hbm [shape: f32[8,8,256], index: 0, kind: input, shape index: {}]
  %s1 = inlined_call_operand.vmem [shape: f32[9,1,512], index: 1, kind: input, shape index: {}]
  %s2 = inlined_call_operand.vmem [shape: f32[9,8,1], index: 2, kind: input, shape index: {}]
  %s3 = inlined_call_operand.vmem [shape: f32[8,1], index: 3, kind: input, shape index: {}]
  %s4 = inlined_call_operand.vmem [shape: f32[8,8], index: 4, kind: input, shape index: {}]
  %s5 = inlined_call_operand.vmem [shape: f32[8,1], index: 5, kind: input, shape index: {}]
  %s6 = inlined_call_operand.hbm [shape: f32[8,8,256], index: 6, kind: output, shape index: {}]
  %s7 = sld [smem:[#allocation0]]
  $region61: #{tpu_custom_call.1} parent=0
    _
  %s9 = ssub.s32 1, %s7
  %s10 = scalar_select 0, %s9, %s7
  $region1: #{tpu_custom_call.1} parent=0
    #allocation2 [shape = 'u8[32768]{0}', space=vmem, size = 0x8000, scoped, tag = 'input window, operand 0']
    #allocation3 [shape = 's32[2]{0}', space=sflag, size = 0x8, scoped, tag = 'scoped memory for tpu_custom_call.1']
    #allocation4 [shape = 's32[2]{0}', space=sflag, size = 0x8, scoped, tag = 'scoped memory for tpu_custom_call.1']
    #allocation5 [shape = 'u8[32768]{0}', space=vmem, size = 0x8000, scoped, tag = 'output window, operand 0']
    %11 = vsyncpa [#allocation3], 0
    %s12 = scalar_lea.sflag [#allocation3], 1
    %13 = vsyncpa %s12, 0
    %14 = vsyncpa [#allocation4], 0
    %s15 = scalar_lea.sflag [#allocation4], 1
    %16 = vsyncpa %s15, 0
    loop: start=0, step=1, limit=6
    $region2: #{tpu_custom_call.1} parent=1 // loop_pre_header
      _
    $region3: #{tpu_custom_call.1} parent=1 // loop_header
      %s18 = sphi 0, %s22
      %p19 = scmp.ge.s32.totalorder %s18, 6
      %s28 = sphi 0, %s30
      %s31 = sphi 0, %s28
      %s32 = sphi 0, %s31
      %s48 = sphi 0, %s32
      %s52 = sphi 0, %s52
      %s54 = sphi 0, %s52
      %s55 = sphi 0, %s54
      %s69 = sphi 0, %s55
      %s73 = sphi 0, %s73
      %s75 = sphi 0, %s73
      %s76 = sphi 0, %s75
      %s90 = sphi 0, %s76
      %s94 = sphi 0, %s94
      %s96 = sphi 0, %s94
      %s97 = sphi 0, %s96
      %s111 = sphi 0, %s97
      %s115 = sphi 0, %s115
      %s117 = sphi 0, %s115
      %s118 = sphi 0, %s117
      %s132 = sphi 0, %s118
      %s136 = sphi 0, %s136
      %s138 = sphi 0, %s136
      %s139 = sphi 0, %s138
      %s153 = sphi 0, %s139
      %s159 = sphi 0, %s161
      %s162 = sphi 0, %s159
      %s163 = sphi 0, %s162
      %s179 = sphi 0, %s163
    $region4: #{tpu_custom_call.1} parent=1 // loop_header_branch
      %21 = sbr.rel (%p19) target = $region8
    $region5: #{tpu_custom_call.1} parent=1 // loop_body
      %s23 = ssub.s32 %s18, 1
      %s24 = ssub.s32 %s18, 2
      %s25 = sadd.s32 %s18, 1
      %s26 = ssub.s32 %s18, %s25
      %p27 = scmp.eq.s32.totalorder %s26, 0
      %s29 = sadd.s32 %s28, 1
      %s30 = scalar_select %p27, %s28, %s29
      %p33 = pneg %p27
      %p34 = scmp.eq.s32.totalorder %s18, 3
      %p35 = por %p33, %p34
      %p36 = scmp.ne.s32.totalorder %s28, %s31
      %p37 = scmp.eq.s32.totalorder %s18, 0
      %p38 = por %p36, %p37
      %p39 = scmp.ne.s32.totalorder %s28, %s31
      %p40 = scmp.eq.s32.totalorder %s23, 3
      %p41 = por %p39, %p40
      %p42 = scmp.ne.s32.totalorder %s31, %s32
      %p43 = scmp.eq.s32.totalorder %s23, 0
      %p44 = por %p42, %p43
      %p45 = scmp.ne.s32.totalorder %s31, %s32
      %p46 = scmp.eq.s32.totalorder %s24, 3
      %p47 = por %p45, %p46
      %p49 = scmp.ne.s32.totalorder %s32, %s48
      %p50 = scmp.eq.s32.totalorder %s24, 0
      %p51 = por %p49, %p50
      %s53 = sadd.s32 %s52, 1
      %p56 = scmp.eq.s32.totalorder %s18, 3
      %p57 = scmp.ne.s32.totalorder %s52, %s54
      %p58 = scmp.eq.s32.totalorder %s18, 0
      %p59 = por %p57, %p58
      %p60 = scmp.ne.s32.totalorder %s52, %s54
      %p61 = scmp.eq.s32.totalorder %s23, 3
      %p62 = por %p60, %p61
      %p63 = scmp.ne.s32.totalorder %s54, %s55
      %p64 = scmp.eq.s32.totalorder %s23, 0
      %p65 = por %p63, %p64
      %p66 = scmp.ne.s32.totalorder %s54, %s55
      %p67 = scmp.eq.s32.totalorder %s24, 3
      %p68 = por %p66, %p67
      %p70 = scmp.ne.s32.totalorder %s55, %s69
      %p71 = scmp.eq.s32.totalorder %s24, 0
      %p72 = por %p70, %p71
      %s74 = sadd.s32 %s73, 1
      %p77 = scmp.eq.s32.totalorder %s18, 3
      %p78 = scmp.ne.s32.totalorder %s73, %s75
      %p79 = scmp.eq.s32.totalorder %s18, 0
      %p80 = por %p78, %p79
      %p81 = scmp.ne.s32.totalorder %s73, %s75
      %p82 = scmp.eq.s32.totalorder %s23, 3
      %p83 = por %p81, %p82
      %p84 = scmp.ne.s32.totalorder %s75, %s76
      %p85 = scmp.eq.s32.totalorder %s23, 0
      %p86 = por %p84, %p85
      %p87 = scmp.ne.s32.totalorder %s75, %s76
      %p88 = scmp.eq.s32.totalorder %s24, 3
      %p89 = por %p87, %p88
      %p91 = scmp.ne.s32.totalorder %s76, %s90
      %p92 = scmp.eq.s32.totalorder %s24, 0
      %p93 = por %p91, %p92
      %s95 = sadd.s32 %s94, 1
      %p98 = scmp.eq.s32.totalorder %s18, 3
      %p99 = scmp.ne.s32.totalorder %s94, %s96
      %p100 = scmp.eq.s32.totalorder %s18, 0
      %p101 = por %p99, %p100
      %p102 = scmp.ne.s32.totalorder %s94, %s96
      %p103 = scmp.eq.s32.totalorder %s23, 3
      %p104 = por %p102, %p103
      %p105 = scmp.ne.s32.totalorder %s96, %s97
      %p106 = scmp.eq.s32.totalorder %s23, 0
      %p107 = por %p105, %p106
      %p108 = scmp.ne.s32.totalorder %s96, %s97
      %p109 = scmp.eq.s32.totalorder %s24, 3
      %p110 = por %p108, %p109
      %p112 = scmp.ne.s32.totalorder %s97, %s111
      %p113 = scmp.eq.s32.totalorder %s24, 0
      %p114 = por %p112, %p113
      %s116 = sadd.s32 %s115, 1
      %p119 = scmp.eq.s32.totalorder %s18, 3
      %p120 = scmp.ne.s32.totalorder %s115, %s117
      %p121 = scmp.eq.s32.totalorder %s18, 0
      %p122 = por %p120, %p121
      %p123 = scmp.ne.s32.totalorder %s115, %s117
      %p124 = scmp.eq.s32.totalorder %s23, 3
      %p125 = por %p123, %p124
      %p126 = scmp.ne.s32.totalorder %s117, %s118
      %p127 = scmp.eq.s32.totalorder %s23, 0
      %p128 = por %p126, %p127
      %p129 = scmp.ne.s32.totalorder %s117, %s118
      %p130 = scmp.eq.s32.totalorder %s24, 3
      %p131 = por %p129, %p130
      %p133 = scmp.ne.s32.totalorder %s118, %s132
      %p134 = scmp.eq.s32.totalorder %s24, 0
      %p135 = por %p133, %p134
      %s137 = sadd.s32 %s136, 1
      %p140 = scmp.eq.s32.totalorder %s18, 3
      %p141 = scmp.ne.s32.totalorder %s136, %s138
      %p142 = scmp.eq.s32.totalorder %s18, 0
      %p143 = por %p141, %p142
      %p144 = scmp.ne.s32.totalorder %s136, %s138
      %p145 = scmp.eq.s32.totalorder %s23, 3
      %p146 = por %p144, %p145
      %p147 = scmp.ne.s32.totalorder %s138, %s139
      %p148 = scmp.eq.s32.totalorder %s23, 0
      %p149 = por %p147, %p148
      %p150 = scmp.ne.s32.totalorder %s138, %s139
      %p151 = scmp.eq.s32.totalorder %s24, 3
      %p152 = por %p150, %p151
      %p154 = scmp.ne.s32.totalorder %s139, %s153
      %p155 = scmp.eq.s32.totalorder %s24, 0
      %p156 = por %p154, %p155
      %s157 = ssub.s32 %s18, %s25
      %p158 = scmp.eq.s32.totalorder %s157, 0
      %s160 = sadd.s32 %s159, 1
      %s161 = scalar_select %p158, %s159, %s160
      %p164 = pneg %p158
      %p165 = scmp.eq.s32.totalorder %s18, 3
      %p166 = por %p164, %p165
      %p167 = scmp.ne.s32.totalorder %s159, %s162
      %p168 = scmp.eq.s32.totalorder %s18, 0
      %p169 = por %p167, %p168
      %p170 = scmp.ne.s32.totalorder %s159, %s162
      %p171 = scmp.eq.s32.totalorder %s23, 3
      %p172 = por %p170, %p171
      %p173 = scmp.ne.s32.totalorder %s162, %s163
      %p174 = scmp.eq.s32.totalorder %s23, 0
      %p175 = por %p173, %p174
      %p176 = scmp.ne.s32.totalorder %s162, %s163
      %p177 = scmp.eq.s32.totalorder %s24, 3
      %p178 = por %p176, %p177
      %p180 = scmp.ne.s32.totalorder %s163, %s179
      %p181 = scmp.eq.s32.totalorder %s24, 0
      %p182 = por %p180, %p181
      %p183 = scmp.le.s32.totalorder 1, %s18
      %p184 = scmp.lt.s32.totalorder %s18, 5
      %p185 = pnand %p183, %p184
      %p186 = pneg %p185
      // Predicated region
      $region9: #{tpu_custom_call.1} parent=5 // pred_check
        _
      $region10: #{tpu_custom_call.1} parent=5 // pred_check_branch
        %188 = sbr.rel (%p185) target = $region12
      $region11: #{tpu_custom_call.1} parent=5 // pred_region
        %s189 = ssub.s32 %s18, 1
        // Predicated region
        $region13: #{tpu_custom_call.1} parent=11 // pred_check
          %p190 = pneg %p65
        $region14: #{tpu_custom_call.1} parent=11 // pred_check_branch
          %192 = sbr.rel (%p190) target = $region16
        $region15: #{tpu_custom_call.1} parent=11 // pred_region
          _
        $region16: #{tpu_custom_call.1} parent=11 // pred_fallthru
          _
        // Predicated region
        $region17: #{tpu_custom_call.1} parent=11 // pred_check
          %p193 = pneg %p86
        $region18: #{tpu_custom_call.1} parent=11 // pred_check_branch
          %195 = sbr.rel (%p193) target = $region20
        $region19: #{tpu_custom_call.1} parent=11 // pred_region
          _
        $region20: #{tpu_custom_call.1} parent=11 // pred_fallthru
          _
        // Predicated region
        $region21: #{tpu_custom_call.1} parent=11 // pred_check
          %p196 = pneg %p107
        $region22: #{tpu_custom_call.1} parent=11 // pred_check_branch
          %198 = sbr.rel (%p196) target = $region24
        $region23: #{tpu_custom_call.1} parent=11 // pred_region
          _
        $region24: #{tpu_custom_call.1} parent=11 // pred_fallthru
          _
        // Predicated region
        $region25: #{tpu_custom_call.1} parent=11 // pred_check
          %p199 = pneg %p128
        $region26: #{tpu_custom_call.1} parent=11 // pred_check_branch
          %201 = sbr.rel (%p199) target = $region28
        $region27: #{tpu_custom_call.1} parent=11 // pred_region
          _
        $region28: #{tpu_custom_call.1} parent=11 // pred_fallthru
          _
        // Predicated region
        $region29: #{tpu_custom_call.1} parent=11 // pred_check
          %p202 = pneg %p149
        $region30: #{tpu_custom_call.1} parent=11 // pred_check_branch
          %204 = sbr.rel (%p202) target = $region32
        $region31: #{tpu_custom_call.1} parent=11 // pred_region
          _
        $region32: #{tpu_custom_call.1} parent=11 // pred_fallthru
          _
      $region12: #{tpu_custom_call.1} parent=5 // pred_fallthru
        _
      %p205 = scmp.lt.s32.totalorder %s18, 4
      // Predicated region
      $region33: #{tpu_custom_call.1} parent=5 // pred_check
        %p206 = pneg %p205
      $region34: #{tpu_custom_call.1} parent=5 // pred_check_branch
        %208 = sbr.rel (%p206) target = $region36
      $region35: #{tpu_custom_call.1} parent=5 // pred_region
        // Predicated region
        $region37: #{tpu_custom_call.1} parent=35 // pred_check
          %p209 = pneg %p38
        $region38: #{tpu_custom_call.1} parent=35 // pred_check_branch
          %211 = sbr.rel (%p209) target = $region40
        $region39: #{tpu_custom_call.1} parent=35 // pred_region
          %s212 = sand.u32 %s28, 1
          %s213 = scalar_lea.sflag [#allocation3], %s212
          %s214 = sand.u32 %s28, 1
          %s215 = smul.addr %s214, 32
          %s216 = scalar_lea.vmem [#allocation2], %s215
          %s217 = smul.u32 2, %s18
          %s219 = ssub.s32 512, 512
          %220 = vsyncadd %s213, %s219
          %s221 = smul.addr %s217, 2
          %s222 = smul.addr %s221, 128
          %s223 = scalar_lea.hbm %s0, %s222
          %s224 = sshll.u32 %s216, 4
          %s225 = int_to_ptr.vmem [resolvable:$true] %s224
          %230 = dma.hbm_to_vmem [thread:$0]  %s223, 512, %s225, %s213, 256, 256, 16
        $region40: #{tpu_custom_call.1} parent=35 // pred_fallthru
          _
      $region36: #{tpu_custom_call.1} parent=5 // pred_fallthru
        _
      %p231 = scmp.le.s32.totalorder 1, %s18
      %p232 = scmp.lt.s32.totalorder %s18, 5
      %p233 = pnand %p231, %p232
      %p234 = pneg %p233
      // Predicated region
      $region41: #{tpu_custom_call.1} parent=5 // pred_check
        _
      $region42: #{tpu_custom_call.1} parent=5 // pred_check_branch
        %236 = sbr.rel (%p233) target = $region44
      $region43: #{tpu_custom_call.1} parent=5 // pred_region
        %s237 = ssub.s32 %s18, 1
        %s238 = sand.u32 %s31, 1
        %s239 = scalar_lea.sflag [#allocation3], %s238
        %s240 = sand.u32 %s31, 1
        %s241 = smul.addr %s240, 32
        %s242 = scalar_lea.vmem [#allocation2], %s241
        // Predicated region
        $region45: #{tpu_custom_call.1} parent=43 // pred_check
          %p243 = pneg %p44
        $region46: #{tpu_custom_call.1} parent=43 // pred_check_branch
          %245 = sbr.rel (%p243) target = $region48
        $region47: #{tpu_custom_call.1} parent=43 // pred_region
          %246 = dma.done %s239, 512
        $region48: #{tpu_custom_call.1} parent=43 // pred_fallthru
          _
        %s247 = sand.u32 %s31, 1
        %s248 = scalar_lea.sflag [#allocation3], %s247
        %s249 = sand.u32 %s31, 1
        %s250 = smul.addr %s249, 32
        %s251 = scalar_lea.vmem [#allocation2], %s250
        %p252 = pneg %p44
        %p253 = pneg %p41
        %p254 = pneg %p65
        %p255 = pneg %p62
        %p256 = pneg %p86
        %p257 = pneg %p83
        %p258 = pneg %p107
        %p259 = pneg %p104
        %p260 = pneg %p128
        %p261 = pneg %p125
        %p262 = pneg %p149
        %p263 = pneg %p146
        %p264 = pneg %p175
        %p265 = pneg %p172
        %s266 = sand.u32 %s162, 1
        %s267 = scalar_lea.sflag [#allocation4], %s266
        %s268 = sand.u32 %s162, 1
        %s269 = smul.addr %s268, 32
        %s270 = scalar_lea.vmem [#allocation5], %s269
        %s271 = smul.u32 2, %s23
        %s272 = smul.u32 2, %s23
        %v273 = vld [vmem:[%s242] sm:$0xff]
        %v274 = vld [vmem:[%s242 + $0x8] sm:$0xff]
        %s275 = scalar_lea.vmem %s242, 16 [#allocation2]
        %v276 = vld [vmem:[%s275] sm:$0xff]
        %v277 = vld [vmem:[%s275 + $0x8] sm:$0xff]
        %v278 = vld [vmem:[%s1] sm:$0xf]
        %v279 = vld [vmem:[%s1 + $0x4] sm:$0xf]
        %v280 = vld [vmem:[%s1 + $0x8] sm:$0xf]
        %v281 = vld [vmem:[%s1 + $0xc] sm:$0xf]
        %v282 = vld [vmem:[%s1 + $0x14] sm:$0xf]
        %v283 = vld [vmem:[%s1 + $0x18] sm:$0xf]
        %v284 = vld [vmem:[%s1 + $0x1c] sm:$0xf]
        %v285 = vld [vmem:[%s1 + $0x20] sm:$0xf]
        %v286 = vld [vmem:[%s2] sm:$0xff]
        %v287 = vld [vmem:[%s2 + $0x8] sm:$0xff]
        %v288 = vld [vmem:[%s2 + $0x10] sm:$0xff]
        %v289 = vld [vmem:[%s2 + $0x18] sm:$0xff]
        %v290 = vld [vmem:[%s2 + $0x20] sm:$0xff]
        %v291 = vld [vmem:[%s2 + $0x28] sm:$0xff]
        %v292 = vld [vmem:[%s2 + $0x30] sm:$0xff]
        %v293 = vld [vmem:[%s2 + $0x38] sm:$0xff]
        %v294 = vld [vmem:[%s2 + $0x40] sm:$0xff]
        %296 = vset.pattern.permute.xlu0 0
        %297 = vperm.xlu0 %296, %v290
        %v298 = vpop.permute.xlu0 %297
        %v300 = vmul.f32 %v273, %v298
        %v301 = vmul.f32 %v274, %v298
        %v302 = vmul.f32 %v276, %v298
        %v303 = vmul.f32 %v277, %v298
        %304 = vrot.lane.b32.xlu0 %v273, 17
        %v305 = vpop.permute.xlu0 %304
        %306 = vrot.lane.b32.xlu0 %v274, 17
        %v307 = vpop.permute.xlu0 %306
        %308 = vrot.lane.b32.xlu0 %v276, 17
        %v309 = vpop.permute.xlu0 %308
        %310 = vrot.lane.b32.xlu0 %v277, 17
        %v311 = vpop.permute.xlu0 %310
        %v312 = vlaneseq
        %v313 = vand.u32 %v312, 127
        %vm314 = vcmp.lt.s32.totalorder %v313, 17
        %v315 = vsel %vm314, %v309, %v311
        %v316 = vsel %vm314, %v307, %v309
        %v317 = vsel %vm314, %v305, %v307
        %v318 = vsel %vm314, %v311, %v305
        %v320 = vlaneseq
        %v321 = vshrl.u32 %v320, 7
        %v322 = vsub.s32 0, %v321
        %v323 = vrot.slane %v278, %v322
        %v324 = vlaneseq
        %v325 = vshrl.u32 %v324, 7
        %v326 = vsub.s32 1, %v325
        %v327 = vrot.slane %v278, %v326
        %v328 = vlaneseq
        %v329 = vshrl.u32 %v328, 7
        %v330 = vsub.s32 2, %v329
        %v331 = vrot.slane %v278, %v330
        %v332 = vlaneseq
        %v333 = vshrl.u32 %v332, 7
        %v334 = vsub.s32 3, %v333
        %v335 = vrot.slane %v278, %v334
        %v340 = vmul.f32 %v318, %v323
        %v341 = vmul.f32 %v317, %v327
        %v342 = vmul.f32 %v316, %v331
        %v343 = vmul.f32 %v315, %v335
        %345 = vset.pattern.permute.xlu0 0
        %346 = vperm.xlu0 %345, %v286
        %v347 = vpop.permute.xlu0 %346
        %v349 = vmul.f32 %v340, %v347
        %v350 = vmul.f32 %v341, %v347
        %v351 = vmul.f32 %v342, %v347
        %v352 = vmul.f32 %v343, %v347
        %v353 = vadd.f32 %v300, %v349
        %v354 = vadd.f32 %v301, %v350
        %v355 = vadd.f32 %v302, %v351
        %v356 = vadd.f32 %v303, %v352
        %357 = vrot.lane.b32.xlu0 %v273, 16
        %v358 = vpop.permute.xlu0 %357
        %359 = vrot.lane.b32.xlu0 %v274, 16
        %v360 = vpop.permute.xlu0 %359
        %361 = vrot.lane.b32.xlu0 %v276, 16
        %v362 = vpop.permute.xlu0 %361
        %363 = vrot.lane.b32.xlu0 %v277, 16
        %v364 = vpop.permute.xlu0 %363
        %vm365 = vcmp.lt.s32.totalorder %v313, 16
        %v366 = vsel %vm365, %v362, %v364
        %v367 = vsel %vm365, %v360, %v362
        %v368 = vsel %vm365, %v358, %v360
        %v369 = vsel %vm365, %v364, %v358
        %v371 = vlaneseq
        %v372 = vshrl.u32 %v371, 7
        %v373 = vsub.s32 0, %v372
        %v374 = vrot.slane %v279, %v373
        %v375 = vlaneseq
        %v376 = vshrl.u32 %v375, 7
        %v377 = vsub.s32 1, %v376
        %v378 = vrot.slane %v279, %v377
        %v379 = vlaneseq
        %v380 = vshrl.u32 %v379, 7
        %v381 = vsub.s32 2, %v380
        %v382 = vrot.slane %v279, %v381
        %v383 = vlaneseq
        %v384 = vshrl.u32 %v383, 7
        %v385 = vsub.s32 3, %v384
        %v386 = vrot.slane %v279, %v385
        %v391 = vmul.f32 %v369, %v374
        %v392 = vmul.f32 %v368, %v378
        %v393 = vmul.f32 %v367, %v382
        %v394 = vmul.f32 %v366, %v386
        %396 = vset.pattern.permute.xlu0 0
        %397 = vperm.xlu0 %396, %v287
        %v398 = vpop.permute.xlu0 %397
        %v400 = vmul.f32 %v391, %v398
        %v401 = vmul.f32 %v392, %v398
        %v402 = vmul.f32 %v393, %v398
        %v403 = vmul.f32 %v394, %v398
        %v404 = vadd.f32 %v353, %v400
        %v405 = vadd.f32 %v354, %v401
        %v406 = vadd.f32 %v355, %v402
        %v407 = vadd.f32 %v356, %v403
        %408 = vrot.lane.b32.xlu0 %v273, 15
        %v409 = vpop.permute.xlu0 %408
        %410 = vrot.lane.b32.xlu0 %v274, 15
        %v411 = vpop.permute.xlu0 %410
        %412 = vrot.lane.b32.xlu0 %v276, 15
        %v413 = vpop.permute.xlu0 %412
        %414 = vrot.lane.b32.xlu0 %v277, 15
        %v415 = vpop.permute.xlu0 %414
        %vm416 = vcmp.lt.s32.totalorder %v313, 15
        %v417 = vsel %vm416, %v413, %v415
        %v418 = vsel %vm416, %v411, %v413
        %v419 = vsel %vm416, %v409, %v411
        %v420 = vsel %vm416, %v415, %v409
        %v422 = vlaneseq
        %v423 = vshrl.u32 %v422, 7
        %v424 = vsub.s32 0, %v423
        %v425 = vrot.slane %v280, %v424
        %v426 = vlaneseq
        %v427 = vshrl.u32 %v426, 7
        %v428 = vsub.s32 1, %v427
        %v429 = vrot.slane %v280, %v428
        %v430 = vlaneseq
        %v431 = vshrl.u32 %v430, 7
        %v432 = vsub.s32 2, %v431
        %v433 = vrot.slane %v280, %v432
        %v434 = vlaneseq
        %v435 = vshrl.u32 %v434, 7
        %v436 = vsub.s32 3, %v435
        %v437 = vrot.slane %v280, %v436
        %v442 = vmul.f32 %v420, %v425
        %v443 = vmul.f32 %v419, %v429
        %v444 = vmul.f32 %v418, %v433
        %v445 = vmul.f32 %v417, %v437
        %447 = vset.pattern.permute.xlu0 0
        %448 = vperm.xlu0 %447, %v288
        %v449 = vpop.permute.xlu0 %448
        %v451 = vmul.f32 %v442, %v449
        %v452 = vmul.f32 %v443, %v449
        %v453 = vmul.f32 %v444, %v449
        %v454 = vmul.f32 %v445, %v449
        %v455 = vadd.f32 %v404, %v451
        %v456 = vadd.f32 %v405, %v452
        %v457 = vadd.f32 %v406, %v453
        %v458 = vadd.f32 %v407, %v454
        %459 = vrot.lane.b32.xlu0 %v273, 1
        %v460 = vpop.permute.xlu0 %459
        %461 = vrot.lane.b32.xlu0 %v274, 1
        %v462 = vpop.permute.xlu0 %461
        %463 = vrot.lane.b32.xlu0 %v276, 1
        %v464 = vpop.permute.xlu0 %463
        %465 = vrot.lane.b32.xlu0 %v277, 1
        %v466 = vpop.permute.xlu0 %465
        %vm467 = vcmp.lt.s32.totalorder %v313, 1
        %v468 = vsel %vm467, %v464, %v466
        %v469 = vsel %vm467, %v462, %v464
        %v470 = vsel %vm467, %v460, %v462
        %v471 = vsel %vm467, %v466, %v460
        %v473 = vlaneseq
        %v474 = vshrl.u32 %v473, 7
        %v475 = vsub.s32 0, %v474
        %v476 = vrot.slane %v281, %v475
        %v477 = vlaneseq
        %v478 = vshrl.u32 %v477, 7
        %v479 = vsub.s32 1, %v478
        %v480 = vrot.slane %v281, %v479
        %v481 = vlaneseq
        %v482 = vshrl.u32 %v481, 7
        %v483 = vsub.s32 2, %v482
        %v484 = vrot.slane %v281, %v483
        %v485 = vlaneseq
        %v486 = vshrl.u32 %v485, 7
        %v487 = vsub.s32 3, %v486
        %v488 = vrot.slane %v281, %v487
        %v493 = vmul.f32 %v471, %v476
        %v494 = vmul.f32 %v470, %v480
        %v495 = vmul.f32 %v469, %v484
        %v496 = vmul.f32 %v468, %v488
        %498 = vset.pattern.permute.xlu0 0
        %499 = vperm.xlu0 %498, %v289
        %v500 = vpop.permute.xlu0 %499
        %v502 = vmul.f32 %v493, %v500
        %v503 = vmul.f32 %v494, %v500
        %v504 = vmul.f32 %v495, %v500
        %v505 = vmul.f32 %v496, %v500
        %v506 = vadd.f32 %v455, %v502
        %v507 = vadd.f32 %v456, %v503
        %v508 = vadd.f32 %v457, %v504
        %v509 = vadd.f32 %v458, %v505
        %510 = vrot.lane.b32.xlu0 %v273, 127
        %v511 = vpop.permute.xlu0 %510
        %512 = vrot.lane.b32.xlu0 %v274, 127
        %v513 = vpop.permute.xlu0 %512
        %514 = vrot.lane.b32.xlu0 %v276, 127
        %v515 = vpop.permute.xlu0 %514
        %516 = vrot.lane.b32.xlu0 %v277, 127
        %v517 = vpop.permute.xlu0 %516
        %vm518 = vcmp.lt.s32.totalorder %v313, 127
        %v519 = vsel %vm518, %v515, %v517
        %v520 = vsel %vm518, %v513, %v515
        %v521 = vsel %vm518, %v511, %v513
        %v522 = vsel %vm518, %v517, %v511
        %v524 = vlaneseq
        %v525 = vshrl.u32 %v524, 7
        %v526 = vsub.s32 0, %v525
        %v527 = vrot.slane %v282, %v526
        %v528 = vlaneseq
        %v529 = vshrl.u32 %v528, 7
        %v530 = vsub.s32 1, %v529
        %v531 = vrot.slane %v282, %v530
        %v532 = vlaneseq
        %v533 = vshrl.u32 %v532, 7
        %v534 = vsub.s32 2, %v533
        %v535 = vrot.slane %v282, %v534
        %v536 = vlaneseq
        %v537 = vshrl.u32 %v536, 7
        %v538 = vsub.s32 3, %v537
        %v539 = vrot.slane %v282, %v538
        %v544 = vmul.f32 %v521, %v527
        %v545 = vmul.f32 %v520, %v531
        %v546 = vmul.f32 %v519, %v535
        %v547 = vmul.f32 %v522, %v539
        %549 = vset.pattern.permute.xlu0 0
        %550 = vperm.xlu0 %549, %v291
        %v551 = vpop.permute.xlu0 %550
        %v553 = vmul.f32 %v544, %v551
        %v554 = vmul.f32 %v545, %v551
        %v555 = vmul.f32 %v546, %v551
        %v556 = vmul.f32 %v547, %v551
        %v557 = vadd.f32 %v506, %v553
        %v558 = vadd.f32 %v507, %v554
        %v559 = vadd.f32 %v508, %v555
        %v560 = vadd.f32 %v509, %v556
        %561 = vrot.lane.b32.xlu0 %v273, 113
        %v562 = vpop.permute.xlu0 %561
        %563 = vrot.lane.b32.xlu0 %v274, 113
        %v564 = vpop.permute.xlu0 %563
        %565 = vrot.lane.b32.xlu0 %v276, 113
        %v566 = vpop.permute.xlu0 %565
        %567 = vrot.lane.b32.xlu0 %v277, 113
        %v568 = vpop.permute.xlu0 %567
        %vm569 = vcmp.lt.s32.totalorder %v313, 113
        %v570 = vsel %vm569, %v566, %v568
        %v571 = vsel %vm569, %v564, %v566
        %v572 = vsel %vm569, %v562, %v564
        %v573 = vsel %vm569, %v568, %v562
        %v575 = vlaneseq
        %v576 = vshrl.u32 %v575, 7
        %v577 = vsub.s32 0, %v576
        %v578 = vrot.slane %v283, %v577
        %v579 = vlaneseq
        %v580 = vshrl.u32 %v579, 7
        %v581 = vsub.s32 1, %v580
        %v582 = vrot.slane %v283, %v581
        %v583 = vlaneseq
        %v584 = vshrl.u32 %v583, 7
        %v585 = vsub.s32 2, %v584
        %v586 = vrot.slane %v283, %v585
        %v587 = vlaneseq
        %v588 = vshrl.u32 %v587, 7
        %v589 = vsub.s32 3, %v588
        %v590 = vrot.slane %v283, %v589
        %v595 = vmul.f32 %v572, %v578
        %v596 = vmul.f32 %v571, %v582
        %v597 = vmul.f32 %v570, %v586
        %v598 = vmul.f32 %v573, %v590
        %600 = vset.pattern.permute.xlu0 0
        %601 = vperm.xlu0 %600, %v292
        %v602 = vpop.permute.xlu0 %601
        %v604 = vmul.f32 %v595, %v602
        %v605 = vmul.f32 %v596, %v602
        %v606 = vmul.f32 %v597, %v602
        %v607 = vmul.f32 %v598, %v602
        %v608 = vadd.f32 %v557, %v604
        %v609 = vadd.f32 %v558, %v605
        %v610 = vadd.f32 %v559, %v606
        %v611 = vadd.f32 %v560, %v607
        %612 = vrot.lane.b32.xlu0 %v273, 112
        %v613 = vpop.permute.xlu0 %612
        %614 = vrot.lane.b32.xlu0 %v274, 112
        %v615 = vpop.permute.xlu0 %614
        %616 = vrot.lane.b32.xlu0 %v276, 112
        %v617 = vpop.permute.xlu0 %616
        %618 = vrot.lane.b32.xlu0 %v277, 112
        %v619 = vpop.permute.xlu0 %618
        %vm620 = vcmp.lt.s32.totalorder %v313, 112
        %v621 = vsel %vm620, %v617, %v619
        %v622 = vsel %vm620, %v615, %v617
        %v623 = vsel %vm620, %v613, %v615
        %v624 = vsel %vm620, %v619, %v613
        %v626 = vlaneseq
        %v627 = vshrl.u32 %v626, 7
        %v628 = vsub.s32 0, %v627
        %v629 = vrot.slane %v284, %v628
        %v630 = vlaneseq
        %v631 = vshrl.u32 %v630, 7
        %v632 = vsub.s32 1, %v631
        %v633 = vrot.slane %v284, %v632
        %v634 = vlaneseq
        %v635 = vshrl.u32 %v634, 7
        %v636 = vsub.s32 2, %v635
        %v637 = vrot.slane %v284, %v636
        %v638 = vlaneseq
        %v639 = vshrl.u32 %v638, 7
        %v640 = vsub.s32 3, %v639
        %v641 = vrot.slane %v284, %v640
        %v646 = vmul.f32 %v623, %v629
        %v647 = vmul.f32 %v622, %v633
        %v648 = vmul.f32 %v621, %v637
        %v649 = vmul.f32 %v624, %v641
        %651 = vset.pattern.permute.xlu0 0
        %652 = vperm.xlu0 %651, %v293
        %v653 = vpop.permute.xlu0 %652
        %v655 = vmul.f32 %v646, %v653
        %v656 = vmul.f32 %v647, %v653
        %v657 = vmul.f32 %v648, %v653
        %v658 = vmul.f32 %v649, %v653
        %v659 = vadd.f32 %v608, %v655
        %v660 = vadd.f32 %v609, %v656
        %v661 = vadd.f32 %v610, %v657
        %v662 = vadd.f32 %v611, %v658
        %663 = vrot.lane.b32.xlu0 %v273, 111
        %v664 = vpop.permute.xlu0 %663
        %665 = vrot.lane.b32.xlu0 %v274, 111
        %v666 = vpop.permute.xlu0 %665
        %667 = vrot.lane.b32.xlu0 %v276, 111
        %v668 = vpop.permute.xlu0 %667
        %669 = vrot.lane.b32.xlu0 %v277, 111
        %v670 = vpop.permute.xlu0 %669
        %vm671 = vcmp.lt.s32.totalorder %v313, 111
        %v672 = vsel %vm671, %v668, %v670
        %v673 = vsel %vm671, %v666, %v668
        %v674 = vsel %vm671, %v664, %v666
        %v675 = vsel %vm671, %v670, %v664
        %v677 = vlaneseq
        %v678 = vshrl.u32 %v677, 7
        %v679 = vsub.s32 0, %v678
        %v680 = vrot.slane %v285, %v679
        %v681 = vlaneseq
        %v682 = vshrl.u32 %v681, 7
        %v683 = vsub.s32 1, %v682
        %v684 = vrot.slane %v285, %v683
        %v685 = vlaneseq
        %v686 = vshrl.u32 %v685, 7
        %v687 = vsub.s32 2, %v686
        %v688 = vrot.slane %v285, %v687
        %v689 = vlaneseq
        %v690 = vshrl.u32 %v689, 7
        %v691 = vsub.s32 3, %v690
        %v692 = vrot.slane %v285, %v691
        %v697 = vmul.f32 %v674, %v680
        %v698 = vmul.f32 %v673, %v684
        %v699 = vmul.f32 %v672, %v688
        %v700 = vmul.f32 %v675, %v692
        %702 = vset.pattern.permute.xlu0 0
        %703 = vperm.xlu0 %702, %v294
        %v704 = vpop.permute.xlu0 %703
        %v706 = vmul.f32 %v697, %v704
        %v707 = vmul.f32 %v698, %v704
        %v708 = vmul.f32 %v699, %v704
        %v709 = vmul.f32 %v700, %v704
        %v710 = vadd.f32 %v659, %v706
        %v711 = vadd.f32 %v660, %v707
        %v712 = vadd.f32 %v661, %v708
        %v713 = vadd.f32 %v662, %v709
        %v714 = vld [vmem:[%s3] sm:$0xff]
        %716 = vset.pattern.permute.xlu0 0
        %717 = vperm.xlu0 %716, %v714
        %v718 = vpop.permute.xlu0 %717
        %v720 = vadd.f32 %v710, %v718
        %v721 = vadd.f32 %v711, %v718
        %v722 = vadd.f32 %v712, %v718
        %v723 = vadd.f32 %v713, %v718
        %v724 = vmax.f32 %v720, 0.0
        %v725 = vmax.f32 %v721, 0.0
        %v726 = vmax.f32 %v722, 0.0
        %v727 = vmax.f32 %v723, 0.0
        %v728 = vld [vmem:[%s4] sm:$0xff]
        %v729 = vld [vmem:[%s5] sm:$0xff]
        %731 = vset.pattern.permute.xlu0 0
        %732 = vperm.xlu0 %731, %v729
        %v733 = vpop.permute.xlu0 %732
        %vm735 = vcmask 64512
        %v737 = vsel %vm735, %v728, 0
        %739 = vmatprep.subr.mxu0 0.0
        %740 = vmatpush1.msra.mxu0 0.0
        %741 = vmatprep.subr.mxu0 0.0
        %742 = vmatpush1.msra.mxu0 0.0
        %743 = vmatprep.subr.mxu0 0.0
        %744 = vmatpush1.msra.mxu0 0.0
        %745 = vmatprep.subr.mxu0 0.0
        %746 = vmatpush1.msra.mxu0 0.0
        %747 = vmatprep.subr.mxu0 0.0
        %748 = vmatpush1.msra.mxu0 0.0
        %749 = vmatprep.subr.mxu0 0.0
        %750 = vmatpush1.msra.mxu0 0.0
        %751 = vmatprep.subr.mxu0 0.0
        %752 = vmatpush1.msra.mxu0 0.0
        %753 = vmatprep.subr.mxu0 0.0
        %754 = vmatpush1.msra.mxu0 0.0
        %755 = vmatprep.subr.mxu0 0.0
        %756 = vmatpush1.msra.mxu0 0.0
        %757 = vmatprep.subr.mxu0 0.0
        %758 = vmatpush1.msra.mxu0 0.0
        %759 = vmatprep.subr.mxu0 0.0
        %760 = vmatpush1.msra.mxu0 0.0
        %761 = vmatprep.subr.mxu0 0.0
        %762 = vmatpush1.msra.mxu0 0.0
        %763 = vmatprep.subr.mxu0 0.0
        %764 = vmatpush1.msra.mxu0 0.0
        %765 = vmatprep.subr.mxu0 0.0
        %766 = vmatpush1.msra.mxu0 0.0
        %767 = vmatprep.subr.mxu0 0.0
        %768 = vmatpush1.msra.mxu0 0.0
        %769 = vmatprep.subr.mxu0 %v725
        %770 = vmatpush1.msra.mxu0 %v724
        %771 = vmatprep.subr.mxu0 0.0
        %772 = vmatpush2.msra.mxu0 0.0
        %773 = vmatprep.subr.mxu0 0.0
        %774 = vmatpush2.msra.mxu0 0.0
        %775 = vmatprep.subr.mxu0 0.0
        %776 = vmatpush2.msra.mxu0 0.0
        %777 = vmatprep.subr.mxu0 0.0
        %778 = vmatpush2.msra.mxu0 0.0
        %779 = vmatprep.subr.mxu0 0.0
        %780 = vmatpush2.msra.mxu0 0.0
        %781 = vmatprep.subr.mxu0 0.0
        %782 = vmatpush2.msra.mxu0 0.0
        %783 = vmatprep.subr.mxu0 0.0
        %784 = vmatpush2.msra.mxu0 0.0
        %785 = vmatprep.subr.mxu0 0.0
        %786 = vmatpush2.msra.mxu0 0.0
        %787 = vmatprep.subr.mxu0 0.0
        %788 = vmatpush2.msra.mxu0 0.0
        %789 = vmatprep.subr.mxu0 0.0
        %790 = vmatpush2.msra.mxu0 0.0
        %791 = vmatprep.subr.mxu0 0.0
        %792 = vmatpush2.msra.mxu0 0.0
        %793 = vmatprep.subr.mxu0 0.0
        %794 = vmatpush2.msra.mxu0 0.0
        %795 = vmatprep.subr.mxu0 0.0
        %796 = vmatpush2.msra.mxu0 0.0
        %797 = vmatprep.subr.mxu0 0.0
        %798 = vmatpush2.msra.mxu0 0.0
        %799 = vmatprep.subr.mxu0 0.0
        %800 = vmatpush2.msra.mxu0 0.0
        %801 = vmatprep.subr.mxu0 0.0
        %802 = vmatpush2.msra.mxu0 0.0
        %803 = vmatprep.mubr.f32.mxu0 0.0
        %804 = vmatmul.mubr.f32.gmra.mxu0 %v737
        %v805 = vpop.f32.mrf.mxu0
        %v806 = vadd.f32 %v733, %v805
        %v807 = vpop.f32.mrf.mxu0
        %v808 = vadd.f32 %v733, %v807
        %809 = vdwg.mxu0
        %810 = vmatprep.subr.mxu0 0.0
        %811 = vmatpush1.msra.mxu0 0.0
        %812 = vmatprep.subr.mxu0 0.0
        %813 = vmatpush1.msra.mxu0 0.0
        %814 = vmatprep.subr.mxu0 0.0
        %815 = vmatpush1.msra.mxu0 0.0
        %816 = vmatprep.subr.mxu0 0.0
        %817 = vmatpush1.msra.mxu0 0.0
        %818 = vmatprep.subr.mxu0 0.0
        %819 = vmatpush1.msra.mxu0 0.0
        %820 = vmatprep.subr.mxu0 0.0
        %821 = vmatpush1.msra.mxu0 0.0
        %822 = vmatprep.subr.mxu0 0.0
        %823 = vmatpush1.msra.mxu0 0.0
        %824 = vmatprep.subr.mxu0 0.0
        %825 = vmatpush1.msra.mxu0 0.0
        %826 = vmatprep.subr.mxu0 0.0
        %827 = vmatpush1.msra.mxu0 0.0
        %828 = vmatprep.subr.mxu0 0.0
        %829 = vmatpush1.msra.mxu0 0.0
        %830 = vmatprep.subr.mxu0 0.0
        %831 = vmatpush1.msra.mxu0 0.0
        %832 = vmatprep.subr.mxu0 0.0
        %833 = vmatpush1.msra.mxu0 0.0
        %834 = vmatprep.subr.mxu0 0.0
        %835 = vmatpush1.msra.mxu0 0.0
        %836 = vmatprep.subr.mxu0 0.0
        %837 = vmatpush1.msra.mxu0 0.0
        %838 = vmatprep.subr.mxu0 0.0
        %839 = vmatpush1.msra.mxu0 0.0
        %840 = vmatprep.subr.mxu0 %v727
        %841 = vmatpush1.msra.mxu0 %v726
        %842 = vmatprep.subr.mxu0 0.0
        %843 = vmatpush2.msra.mxu0 0.0
        %844 = vmatprep.subr.mxu0 0.0
        %845 = vmatpush2.msra.mxu0 0.0
        %846 = vmatprep.subr.mxu0 0.0
        %847 = vmatpush2.msra.mxu0 0.0
        %848 = vmatprep.subr.mxu0 0.0
        %849 = vmatpush2.msra.mxu0 0.0
        %850 = vmatprep.subr.mxu0 0.0
        %851 = vmatpush2.msra.mxu0 0.0
        %852 = vmatprep.subr.mxu0 0.0
        %853 = vmatpush2.msra.mxu0 0.0
        %854 = vmatprep.subr.mxu0 0.0
        %855 = vmatpush2.msra.mxu0 0.0
        %856 = vmatprep.subr.mxu0 0.0
        %857 = vmatpush2.msra.mxu0 0.0
        %858 = vmatprep.subr.mxu0 0.0
        %859 = vmatpush2.msra.mxu0 0.0
        %860 = vmatprep.subr.mxu0 0.0
        %861 = vmatpush2.msra.mxu0 0.0
        %862 = vmatprep.subr.mxu0 0.0
        %863 = vmatpush2.msra.mxu0 0.0
        %864 = vmatprep.subr.mxu0 0.0
        %865 = vmatpush2.msra.mxu0 0.0
        %866 = vmatprep.subr.mxu0 0.0
        %867 = vmatpush2.msra.mxu0 0.0
        %868 = vmatprep.subr.mxu0 0.0
        %869 = vmatpush2.msra.mxu0 0.0
        %870 = vmatprep.subr.mxu0 0.0
        %871 = vmatpush2.msra.mxu0 0.0
        %872 = vmatprep.subr.mxu0 0.0
        %873 = vmatpush2.msra.mxu0 0.0
        %874 = vmatprep.mubr.f32.mxu0 0.0
        %875 = vmatmul.mubr.f32.gmra.mxu0 %v737
        %v876 = vpop.f32.mrf.mxu0
        %v877 = vadd.f32 %v733, %v876
        %v878 = vpop.f32.mrf.mxu0
        %v879 = vadd.f32 %v733, %v878
        %880 = vdwg.mxu0
        %v881 = vadd.f32 %v806, %v273
        %v882 = vadd.f32 %v808, %v274
        %v883 = vadd.f32 %v877, %v276
        %v884 = vadd.f32 %v879, %v277
        %885 = vst [vmem:[%s270] sm:$0xff] %v881
        %886 = vst [vmem:[%s270 + $0x8] sm:$0xff] %v882
        %s887 = scalar_lea.vmem %s270, 16 [#allocation5]
        %888 = vst [vmem:[%s887] sm:$0xff] %v883
        %889 = vst [vmem:[%s887 + $0x8] sm:$0xff] %v884
        %s890 = sand.u32 %s162, 1
        %s891 = scalar_lea.sflag [#allocation4], %s890
        %s892 = sand.u32 %s162, 1
        %s893 = smul.addr %s892, 32
        %s894 = scalar_lea.vmem [#allocation5], %s893
        // Predicated region
        $region49: #{tpu_custom_call.1} parent=43 // pred_check
          %p895 = pneg %p172
        $region50: #{tpu_custom_call.1} parent=43 // pred_check_branch
          %897 = sbr.rel (%p895) target = $region52
        $region51: #{tpu_custom_call.1} parent=43 // pred_region
          %s898 = smul.u32 2, %s23
          %s900 = ssub.s32 512, 512
          %901 = vsyncadd %s891, %s900
          %s902 = smul.addr %s898, 2
          %s903 = smul.addr %s902, 128
          %s904 = scalar_lea.hbm %s6, %s903
          %s905 = sshll.u32 %s894, 4
          %s906 = int_to_ptr.vmem [resolvable:$true] %s905
          %911 = dma.vmem_to_hbm [thread:$0]  %s906, 512, %s904, %s891, 256, 256, 16
        $region52: #{tpu_custom_call.1} parent=43 // pred_fallthru
          _
      $region44: #{tpu_custom_call.1} parent=5 // pred_fallthru
        _
      %p912 = scmp.le.s32.totalorder 2, %s18
      // Predicated region
      $region53: #{tpu_custom_call.1} parent=5 // pred_check
        %p913 = pneg %p912
      $region54: #{tpu_custom_call.1} parent=5 // pred_check_branch
        %915 = sbr.rel (%p913) target = $region56
      $region55: #{tpu_custom_call.1} parent=5 // pred_region
        %s916 = ssub.s32 %s18, 2
        // Predicated region
        $region57: #{tpu_custom_call.1} parent=55 // pred_check
          %p917 = pneg %p178
        $region58: #{tpu_custom_call.1} parent=55 // pred_check_branch
          %919 = sbr.rel (%p917) target = $region60
        $region59: #{tpu_custom_call.1} parent=55 // pred_region
          %s920 = sand.u32 %s163, 1
          %s921 = scalar_lea.sflag [#allocation4], %s920
          %s922 = sand.u32 %s163, 1
          %s923 = smul.addr %s922, 32
          %s924 = scalar_lea.vmem [#allocation5], %s923
          %925 = dma.done %s921, 512
        $region60: #{tpu_custom_call.1} parent=55 // pred_fallthru
          _
      $region56: #{tpu_custom_call.1} parent=5 // pred_fallthru
        _
    $region6: #{tpu_custom_call.1} parent=1 // loop_footer
      %s22 = sadd.s32 1, %s18
    $region7: #{tpu_custom_call.1} parent=1 // loop_footer_branch
      %17 = sbr.rel target = $region3
    $region8: #{tpu_custom_call.1} parent=1 // loop_exit
      _
    %926 = vsyncpa [#allocation3], 1
    %s927 = scalar_lea.sflag [#allocation3], 1
    %928 = vsyncpa %s927, 1
    %929 = vsyncpa [#allocation4], 1
    %s930 = scalar_lea.sflag [#allocation4], 1
    %931 = vsyncpa %s930, 1

</llo_original>
